<compile_context>
chip_gen: v6e
topology: v6e:2x2x1
jax: 0.10.0
libtpu: 0.0.40
codegen_flags: <defaults>
</compile_context>

<pallas_src>
import jax
import jax.numpy as jnp
from jax.experimental import pallas as pl
from jax.experimental.pallas import tpu as pltpu

LANE = 128  # MXU / lane width


def _round_up(x, m):
    return ((x + m - 1) // m) * m


# ---------------------------------------------------------------------------
# Kernel: one batch tile of the 3-layer MLP policy head.
# ---------------------------------------------------------------------------
def actor_kernel(obs_ref,            # (tb, F)   batch tile (pipelined)
                 w1_ref, b1_ref,     # (F,  Hp), (1, Hp)   VMEM-resident
                 w2_ref, b2_ref,     # (Hp, Hp), (1, Hp)
                 w3_ref, b3_ref,     # (Hp, Ap), (1, Ap)
                 mu_ref):            # (tb, A)   true-width output tile
    A = mu_ref.shape[-1]
    mxu_dt = w1_ref.dtype            # f32 or bf16 MXU operands
    x = obs_ref[...].astype(mxu_dt)

    # Layer 1: Linear + ReLU (MXU matmul, f32 accumulate, f32 VPU epilogue)
    h1 = jnp.dot(x, w1_ref[...], preferred_element_type=jnp.float32)
    h1 = jnp.maximum(h1 + b1_ref[...], 0.0)

    # Layer 2: Linear + ReLU
    h2 = jnp.dot(h1.astype(mxu_dt), w2_ref[...],
                 preferred_element_type=jnp.float32)
    h2 = jnp.maximum(h2 + b2_ref[...], 0.0)

    # Layer 3: Linear + tanh (tanh goes to the EUP slot)
    mu = jnp.dot(h2.astype(mxu_dt), w3_ref[...],
                 preferred_element_type=jnp.float32)
    mu = jnp.tanh(mu + b3_ref[...])

    # Store only the true action columns (padded lanes are sliced off here,
    # so the HBM writeback is exactly tb*A*4 bytes).
    mu_ref[...] = mu[:, :A].astype(mu_ref.dtype)


# ---------------------------------------------------------------------------
# Parameter prep: pad ONLY the hidden / action weight dims to lane multiples.
# Weights are tiny and VMEM-resident, so this costs nothing in HBM traffic.
# The obs feature dim F is NOT padded (full-dim BlockSpec exception).
# ---------------------------------------------------------------------------
def _pad2(x, rows, cols):
    return jnp.pad(x, ((0, rows - x.shape[0]), (0, cols - x.shape[1])))


def pad_params(params, mxu_dtype=jnp.bfloat16):
    F, H = params["w1"].shape
    _, A = params["w3"].shape
    Hp = _round_up(H, LANE)
    Ap = _round_up(A, LANE)

    padded = {
        "w1": _pad2(params["w1"], F, Hp).astype(mxu_dtype),
        "b1": _pad2(params["b1"], 1, Hp).astype(jnp.float32),
        "w2": _pad2(params["w2"], Hp, Hp).astype(mxu_dtype),
        "b2": _pad2(params["b2"], 1, Hp).astype(jnp.float32),
        "w3": _pad2(params["w3"], Hp, Ap).astype(mxu_dtype),
        "b3": _pad2(params["b3"], 1, Ap).astype(jnp.float32),
    }
    dims = {"F": F, "H": H, "A": A, "Hp": Hp, "Ap": Ap}
    return padded, dims


# ---------------------------------------------------------------------------
# Batch-tile selection: multiple of 8, <= block_b, prefer a tile that divides
# B exactly (no obs pad copy) and gives >= min_steps grid steps (v7x megacore).
# ---------------------------------------------------------------------------
def _choose_tb(B, block_b=1024, min_steps=2):
    if B <= 8:
        return 8
    tb_max = min(block_b, _round_up(-(-B // min_steps), 8))
    tb_max = max(8, (tb_max // 8) * 8)
    if B % 8 == 0:
        tb = tb_max
        while tb >= 8:
            if B % tb == 0:
                return tb
            tb -= 8
    return tb_max  # falls back to padding the last tile


# ---------------------------------------------------------------------------
# Wrapper: batch-tiled pallas_call; returns (mu, std) of TruncatedNormal.
# ---------------------------------------------------------------------------
def actor_forward(obs, padded, dims, std_scalar, *, block_b=1024, min_steps=2):
    B, F = obs.shape
    assert F == dims["F"]
    Hp, Ap, A = dims["Hp"], dims["Ap"], dims["A"]

    tb = _choose_tb(B, block_b=block_b, min_steps=min_steps)
    Bp = _round_up(B, tb)

    obs_f32 = obs.astype(jnp.float32)
    if Bp != B:
        # Only materialized when no divisor tile exists (ragged batch).
        obs_f32 = jnp.pad(obs_f32, ((0, Bp - B), (0, 0)))

    resident = lambda shape: pl.BlockSpec(shape, lambda i: (0, 0))

    flops = 2 * Bp * (F * Hp + Hp * Hp + Hp * Ap)
    bytes_accessed = int(
        Bp * F * 4
        + sum(int(v.size) * v.dtype.itemsize for v in padded.values())
        + Bp * A * 4
    )
    cost = pl.CostEstimate(
        flops=flops, transcendentals=Bp * Ap, bytes_accessed=bytes_accessed
    )

    mu_p = pl.pallas_call(
        actor_kernel,
        out_shape=jax.ShapeDtypeStruct((Bp, A), jnp.float32),
        grid=(Bp // tb,),
        in_specs=[
            pl.BlockSpec((tb, F), lambda i: (i, 0)),   # obs: tiled over batch
            resident((F, Hp)), resident((1, Hp)),      # layer 1 (VMEM-resident)
            resident((Hp, Hp)), resident((1, Hp)),     # layer 2
            resident((Hp, Ap)), resident((1, Ap)),     # layer 3
        ],
        out_specs=pl.BlockSpec((tb, A), lambda i: (i, 0)),
        compiler_params=pltpu.CompilerParams(
            dimension_semantics=("parallel",),         # megacore-shardable
        ),
        cost_estimate=cost,
    )(
        obs_f32,
        padded["w1"], padded["b1"],
        padded["w2"], padded["b2"],
        padded["w3"], padded["b3"],
    )

    mu = mu_p[:B] if Bp != B else mu_p
    # std = torch.ones_like(mu) * std  -> constant broadcast; done in the
    # wrapper instead of burning a second (B, A) HBM store in the kernel.
    std = jnp.full((B, A), std_scalar, dtype=mu.dtype)
    return mu, std


def init_actor_params(key, feature_dim, hidden_dim, action_dim):
    """Deterministic synthetic init (stands in for utils.weight_init)."""
    k1, k2, k3 = jax.random.split(key, 3)

    def lin(k, fan_in, fan_out):
        w = jax.random.normal(k, (fan_in, fan_out), dtype=jnp.float32)
        w = w * (1.0 / jnp.sqrt(jnp.float32(fan_in)))
        b = jnp.zeros((1, fan_out), dtype=jnp.float32)
        return w, b

    w1, b1 = lin(k1, feature_dim, hidden_dim)
    w2, b2 = lin(k2, hidden_dim, hidden_dim)
    w3, b3 = lin(k3, hidden_dim, action_dim)
    return {"w1": w1, "b1": b1, "w2": w2, "b2": b2, "w3": w3, "b3": b3}


def _ref_forward(obs, params, std_scalar):
    h1 = jnp.maximum(obs @ params["w1"] + params["b1"], 0.0)
    h2 = jnp.maximum(h1 @ params["w2"] + params["b2"], 0.0)
    mu = jnp.tanh(h2 @ params["w3"] + params["b3"])
    return mu, jnp.ones_like(mu) * std_scalar


if __name__ == "__main__":
    # Small shapes consistent with the module:
    #   feature_dim=32, hidden_dim=32, action_shape=(4,), batch=8
    F, H, A = 32, 32, 4
    STD = 0.2

    key = jax.random.PRNGKey(0)
    k_obs, k_obs2, k_params = jax.random.split(key, 3)
    params = init_actor_params(k_params, F, H, A)

    # --- f32 MXU path (exact-ish), B=8, single grid step -----------------
    B = 8
    obs = jax.random.normal(k_obs, (B, F), dtype=jnp.float32)
    mu_ref, std_ref = _ref_forward(obs, params, STD)

    padded_f32, dims = pad_params(params, mxu_dtype=jnp.float32)
    mu, std = actor_forward(obs, padded_f32, dims, STD)
    jax.block_until_ready((mu, std))
    assert mu.shape == (B, A) and std.shape == (B, A)
    assert jnp.allclose(mu, mu_ref, atol=1e-5), "mu mismatch (f32)"
    assert jnp.allclose(std, std_ref, atol=1e-6), "std mismatch"

    # --- bf16 MXU operands (default fast path), f32 accumulate/epilogue --
    padded_bf16, dims_bf16 = pad_params(params)  # bf16 default
    mu_bf16, _ = actor_forward(obs, padded_bf16, dims_bf16, STD)
    jax.block_until_ready(mu_bf16)
    assert jnp.allclose(mu_bf16, mu_ref, atol=5e-2), "mu mismatch (bf16)"

    # --- multi-step grid + ragged batch (exercises tb choice / row pad) --
    B2 = 44  # tb -> 24, Bp -> 48, grid of 2 parallel steps
    obs2 = jax.random.normal(k_obs2, (B2, F), dtype=jnp.float32)
    mu_ref2, _ = _ref_forward(obs2, params, STD)
    mu2, std2 = actor_forward(obs2, padded_f32, dims, STD)
    jax.block_until_ready((mu2, std2))
    assert mu2.shape == (B2, A)
    assert jnp.allclose(mu2, mu_ref2, atol=1e-5), "mu mismatch (f32, tiled)"

    # TODO(synk): utils.TruncatedNormal is a distribution object (sampling /
    # log_prob with clamping); the kernel returns its parameters (mu, std).
    print("KERNEL_OK")
</pallas_src>

<mosaic_0001>
module attributes {stable_mosaic.version = 11 : i64} {
  func.func @actor_kernel(%arg0: i32, %arg1: memref<8x32xf32, #tpu.memory_space<vmem>>, %arg2: memref<32x128xf32, #tpu.memory_space<vmem>>, %arg3: memref<1x128xf32, #tpu.memory_space<vmem>>, %arg4: memref<128x128xf32, #tpu.memory_space<vmem>>, %arg5: memref<1x128xf32, #tpu.memory_space<vmem>>, %arg6: memref<128x128xf32, #tpu.memory_space<vmem>>, %arg7: memref<1x128xf32, #tpu.memory_space<vmem>>, %arg8: memref<8x4xf32, #tpu.memory_space<vmem>>) attributes {dimension_semantics = [#tpu.dimension_semantics<parallel>], iteration_bounds = array<i64: 1>, scalar_prefetch = 0 : i64, scratch_operands = 0 : i64, tpu.core_type = #tpu.core_type<tc>, window_params = [{transform_indices = @transform_0, window_bounds = array<i64: 8, 32>}, {pipeline_mode = #tpu.pipeline_mode<synchronous>, transform_indices = @transform_1, window_bounds = array<i64: 32, 128>}, {pipeline_mode = #tpu.pipeline_mode<synchronous>, transform_indices = @transform_2, window_bounds = array<i64: 1, 128>}, {pipeline_mode = #tpu.pipeline_mode<synchronous>, transform_indices = @transform_3, window_bounds = array<i64: 128, 128>}, {pipeline_mode = #tpu.pipeline_mode<synchronous>, transform_indices = @transform_4, window_bounds = array<i64: 1, 128>}, {pipeline_mode = #tpu.pipeline_mode<synchronous>, transform_indices = @transform_5, window_bounds = array<i64: 128, 128>}, {pipeline_mode = #tpu.pipeline_mode<synchronous>, transform_indices = @transform_6, window_bounds = array<i64: 1, 128>}, {transform_indices = @transform_7, window_bounds = array<i64: 8, 4>}]} {
    %c0 = arith.constant 0 : index
    %c0_0 = arith.constant 0 : index
    %0 = vector.load %arg1[%c0, %c0_0] : memref<8x32xf32, #tpu.memory_space<vmem>>, vector<8x32xf32>
    %c0_1 = arith.constant 0 : index
    %c0_2 = arith.constant 0 : index
    %1 = vector.load %arg2[%c0_1, %c0_2] : memref<32x128xf32, #tpu.memory_space<vmem>>, vector<32x128xf32>
    %cst = arith.constant dense<0.000000e+00> : vector<8x128xf32>
    %2 = tpu.matmul %0, %1, %cst {dimension_numbers = #tpu.dot_dimension_numbers<[1], [0], [0], [1], [0, 0, 1, 1], [], []>} : vector<8x32xf32>, vector<32x128xf32>, vector<8x128xf32> -> vector<8x128xf32>
    %c0_3 = arith.constant 0 : index
    %c0_4 = arith.constant 0 : index
    %3 = vector.load %arg3[%c0_3, %c0_4] : memref<1x128xf32, #tpu.memory_space<vmem>>, vector<1x128xf32>
    %4 = vector.broadcast %3 : vector<1x128xf32> to vector<8x128xf32>
    %5 = arith.addf %2, %4 : vector<8x128xf32>
    %cst_5 = arith.constant 0.000000e+00 : f32
    %6 = vector.broadcast %cst_5 : f32 to vector<8x128xf32>
    %7 = arith.maximumf %5, %6 : vector<8x128xf32>
    %c0_6 = arith.constant 0 : index
    %c0_7 = arith.constant 0 : index
    %8 = vector.load %arg4[%c0_6, %c0_7] : memref<128x128xf32, #tpu.memory_space<vmem>>, vector<128x128xf32>
    %cst_8 = arith.constant dense<0.000000e+00> : vector<8x128xf32>
    %9 = tpu.matmul %7, %8, %cst_8 {dimension_numbers = #tpu.dot_dimension_numbers<[1], [0], [0], [1], [0, 0, 1, 1], [], []>} : vector<8x128xf32>, vector<128x128xf32>, vector<8x128xf32> -> vector<8x128xf32>
    %c0_9 = arith.constant 0 : index
    %c0_10 = arith.constant 0 : index
    %10 = vector.load %arg5[%c0_9, %c0_10] : memref<1x128xf32, #tpu.memory_space<vmem>>, vector<1x128xf32>
    %11 = vector.broadcast %10 : vector<1x128xf32> to vector<8x128xf32>
    %12 = arith.addf %9, %11 : vector<8x128xf32>
    %cst_11 = arith.constant 0.000000e+00 : f32
    %13 = vector.broadcast %cst_11 : f32 to vector<8x128xf32>
    %14 = arith.maximumf %12, %13 : vector<8x128xf32>
    %c0_12 = arith.constant 0 : index
    %c0_13 = arith.constant 0 : index
    %15 = vector.load %arg6[%c0_12, %c0_13] : memref<128x128xf32, #tpu.memory_space<vmem>>, vector<128x128xf32>
    %cst_14 = arith.constant dense<0.000000e+00> : vector<8x128xf32>
    %16 = tpu.matmul %14, %15, %cst_14 {dimension_numbers = #tpu.dot_dimension_numbers<[1], [0], [0], [1], [0, 0, 1, 1], [], []>} : vector<8x128xf32>, vector<128x128xf32>, vector<8x128xf32> -> vector<8x128xf32>
    %c0_15 = arith.constant 0 : index
    %c0_16 = arith.constant 0 : index
    %17 = vector.load %arg7[%c0_15, %c0_16] : memref<1x128xf32, #tpu.memory_space<vmem>>, vector<1x128xf32>
    %18 = vector.broadcast %17 : vector<1x128xf32> to vector<8x128xf32>
    %19 = arith.addf %16, %18 : vector<8x128xf32>
    %20 = math.tanh %19 : vector<8x128xf32>
    %21 = vector.extract_strided_slice %20 {offsets = [0, 0], sizes = [8, 4], strides = [1, 1]} : vector<8x128xf32> to vector<8x4xf32>
    %c0_17 = arith.constant 0 : index
    %c0_18 = arith.constant 0 : index
    %22 = vector.load %arg8[%c0_17, %c0_18] : memref<8x4xf32, #tpu.memory_space<vmem>>, vector<8x4xf32>
    tpu.vector_store %arg8[%c0_17, %c0_18], %21 {strides = array<i32>} : memref<8x4xf32, #tpu.memory_space<vmem>>, vector<8x4xf32>,
    return
  }
  func.func @transform_0(%arg0: i32) -> (i32, i32) {
    %c0_i32 = arith.constant 0 : i32
    %c0_i32_0 = arith.constant 0 : i32
    return %arg0, %c0_i32 : i32, i32
  }
  func.func @transform_1(%arg0: i32) -> (i32, i32) {
    %c0_i32 = arith.constant 0 : i32
    %c0_i32_0 = arith.constant 0 : i32
    %c0_i32_1 = arith.constant 0 : i32
    return %c0_i32, %c0_i32_0 : i32, i32
  }
  func.func @transform_2(%arg0: i32) -> (i32, i32) {
    %c0_i32 = arith.constant 0 : i32
    %c0_i32_0 = arith.constant 0 : i32
    %c0_i32_1 = arith.constant 0 : i32
    return %c0_i32, %c0_i32_0 : i32, i32
  }
  func.func @transform_3(%arg0: i32) -> (i32, i32) {
    %c0_i32 = arith.constant 0 : i32
    %c0_i32_0 = arith.constant 0 : i32
    %c0_i32_1 = arith.constant 0 : i32
    return %c0_i32, %c0_i32_0 : i32, i32
  }
  func.func @transform_4(%arg0: i32) -> (i32, i32) {
    %c0_i32 = arith.constant 0 : i32
    %c0_i32_0 = arith.constant 0 : i32
    %c0_i32_1 = arith.constant 0 : i32
    return %c0_i32, %c0_i32_0 : i32, i32
  }
  func.func @transform_5(%arg0: i32) -> (i32, i32) {
    %c0_i32 = arith.constant 0 : i32
    %c0_i32_0 = arith.constant 0 : i32
    %c0_i32_1 = arith.constant 0 : i32
    return %c0_i32, %c0_i32_0 : i32, i32
  }
  func.func @transform_6(%arg0: i32) -> (i32, i32) {
    %c0_i32 = arith.constant 0 : i32
    %c0_i32_0 = arith.constant 0 : i32
    %c0_i32_1 = arith.constant 0 : i32
    return %c0_i32, %c0_i32_0 : i32, i32
  }
  func.func @transform_7(%arg0: i32) -> (i32, i32) {
    %c0_i32 = arith.constant 0 : i32
    %c0_i32_0 = arith.constant 0 : i32
    return %arg0, %c0_i32 : i32, i32
  }
}

</mosaic_0001>

<llo_original>
// kernel: tpu_custom_call.1
$region0: #{tpu_custom_call.1}
  #allocation0 [shape = 'u32[]', space=smem, size = 0x4, offset = 0x4, fixed_abs, tag = 'smem constant byte address 0x4 - core index']
  #allocation1 [shape = 'u32[144,128]{1,0:T(1,128)}', space=vmem, size = 0x12000, scoped, tag = 'internal scratch']
  %s0 = inlined_call_operand.hbm [shape: f32[8,32], index: 0, kind: input, shape index: {}]
  %s1 = inlined_call_operand.hbm [shape: f32[32,128], index: 1, kind: input, shape index: {}]
  %s2 = inlined_call_operand.vmem [shape: f32[1,128], index: 2, kind: input, shape index: {}]
  %s3 = inlined_call_operand.hbm [shape: f32[128,128], index: 3, kind: input, shape index: {}]
  %s4 = inlined_call_operand.vmem [shape: f32[1,128], index: 4, kind: input, shape index: {}]
  %s5 = inlined_call_operand.hbm [shape: f32[128,128], index: 5, kind: input, shape index: {}]
  %s6 = inlined_call_operand.vmem [shape: f32[1,128], index: 6, kind: input, shape index: {}]
  %s7 = inlined_call_operand.vmem [shape: f32[8,4], index: 7, kind: output, shape index: {}]
  %s8 = sld [smem:[#allocation0]]
  $region54: #{tpu_custom_call.1} parent=0
    _
  %s10 = ssub.s32 1, %s8
  %s11 = scalar_select 0, %s10, %s8
  $region1: #{tpu_custom_call.1} parent=0
    #allocation2 [shape = 'u8[4096]{0}', space=vmem, size = 0x1000, scoped, tag = 'input window, operand 0, single buffered']
    #allocation3 [shape = 's32[1]{0}', space=sflag, size = 0x4, scoped, tag = 'scoped memory for tpu_custom_call.1']
    #allocation4 [shape = 'u8[16384]{0}', space=vmem, size = 0x4000, scoped, tag = 'input window, operand 1, single buffered']
    #allocation5 [shape = 's32[1]{0}', space=sflag, size = 0x4, scoped, tag = 'scoped memory for tpu_custom_call.1']
    #allocation6 [shape = 'u8[65536]{0}', space=vmem, size = 0x10000, scoped, tag = 'input window, operand 3, single buffered']
    #allocation7 [shape = 'u8[65536]{0}', space=vmem, size = 0x10000, scoped, tag = 'input window, operand 5, single buffered']
    #allocation8 [shape = 's32[1]{0}', space=sflag, size = 0x4, scoped, tag = 'scoped memory for tpu_custom_call.1']
    %12 = vsyncpa [#allocation3], 0
    %13 = vsyncpa [#allocation5], 0
    %14 = vsyncpa [#allocation8], 0
    // Predicated region
    $region2: #{tpu_custom_call.1} parent=1 // pred_check
      _
    $region3: #{tpu_custom_call.1} parent=1 // pred_check_branch
      %16 = sbr.rel (0) target = $region5
    $region4: #{tpu_custom_call.1} parent=1 // pred_region
      %s18 = ssub.s32 128, 128
      %19 = vsyncadd [#allocation3], %s18
      %s21 = sshll.u32 [#allocation2], 4
      %s22 = int_to_ptr.vmem [resolvable:$true] %s21
      %24 = dma.hbm_to_vmem [thread:$0]  %s0, 128, %s22, [#allocation3]
    $region5: #{tpu_custom_call.1} parent=1 // pred_fallthru
      _
    // Predicated region
    $region6: #{tpu_custom_call.1} parent=1 // pred_check
      _
    $region7: #{tpu_custom_call.1} parent=1 // pred_check_branch
      %26 = sbr.rel (0) target = $region9
    $region8: #{tpu_custom_call.1} parent=1 // pred_region
      %s28 = ssub.s32 512, 512
      %29 = vsyncadd [#allocation5], %s28
      %s30 = sshll.u32 [#allocation4], 4
      %s31 = int_to_ptr.vmem [resolvable:$true] %s30
      %36 = dma.hbm_to_vmem [thread:$0]  %s1, 512, %s31, [#allocation5], 128, 128, 8
    $region9: #{tpu_custom_call.1} parent=1 // pred_fallthru
      _
    // Predicated region
    $region10: #{tpu_custom_call.1} parent=1 // pred_check
      _
    $region11: #{tpu_custom_call.1} parent=1 // pred_check_branch
      %38 = sbr.rel (0) target = $region13
    $region12: #{tpu_custom_call.1} parent=1 // pred_region
      _
    $region13: #{tpu_custom_call.1} parent=1 // pred_fallthru
      _
    // Predicated region
    $region14: #{tpu_custom_call.1} parent=1 // pred_check
      _
    $region15: #{tpu_custom_call.1} parent=1 // pred_check_branch
      %40 = sbr.rel (0) target = $region17
    $region16: #{tpu_custom_call.1} parent=1 // pred_region
      %s42 = ssub.s32 2048, 2048
      %43 = vsyncadd [#allocation5], %s42
      %s44 = sshll.u32 [#allocation6], 4
      %s45 = int_to_ptr.vmem [resolvable:$true] %s44
      %50 = dma.hbm_to_vmem [thread:$0]  %s3, 2048, %s45, [#allocation5], 128, 128, 8
    $region17: #{tpu_custom_call.1} parent=1 // pred_fallthru
      _
    // Predicated region
    $region18: #{tpu_custom_call.1} parent=1 // pred_check
      _
    $region19: #{tpu_custom_call.1} parent=1 // pred_check_branch
      %52 = sbr.rel (0) target = $region21
    $region20: #{tpu_custom_call.1} parent=1 // pred_region
      _
    $region21: #{tpu_custom_call.1} parent=1 // pred_fallthru
      _
    // Predicated region
    $region22: #{tpu_custom_call.1} parent=1 // pred_check
      _
    $region23: #{tpu_custom_call.1} parent=1 // pred_check_branch
      %54 = sbr.rel (0) target = $region25
    $region24: #{tpu_custom_call.1} parent=1 // pred_region
      %s56 = ssub.s32 2048, 2048
      %57 = vsyncadd [#allocation8], %s56
      %s58 = sshll.u32 [#allocation7], 4
      %s59 = int_to_ptr.vmem [resolvable:$true] %s58
      %64 = dma.hbm_to_vmem [thread:$0]  %s5, 2048, %s59, [#allocation8], 128, 128, 8
    $region25: #{tpu_custom_call.1} parent=1 // pred_fallthru
      _
    // Predicated region
    $region26: #{tpu_custom_call.1} parent=1 // pred_check
      _
    $region27: #{tpu_custom_call.1} parent=1 // pred_check_branch
      %66 = sbr.rel (0) target = $region29
    $region28: #{tpu_custom_call.1} parent=1 // pred_region
      _
    $region29: #{tpu_custom_call.1} parent=1 // pred_fallthru
      _
    // Predicated region
    $region30: #{tpu_custom_call.1} parent=1 // pred_check
      _
    $region31: #{tpu_custom_call.1} parent=1 // pred_check_branch
      %68 = sbr.rel (0) target = $region33
    $region32: #{tpu_custom_call.1} parent=1 // pred_region
      %69 = dma.done [#allocation3], 128
    $region33: #{tpu_custom_call.1} parent=1 // pred_fallthru
      _
    // Predicated region
    $region34: #{tpu_custom_call.1} parent=1 // pred_check
      _
    $region35: #{tpu_custom_call.1} parent=1 // pred_check_branch
      %71 = sbr.rel (0) target = $region37
    $region36: #{tpu_custom_call.1} parent=1 // pred_region
      %72 = dma.done [#allocation5], 512
    $region37: #{tpu_custom_call.1} parent=1 // pred_fallthru
      _
    // Predicated region
    $region38: #{tpu_custom_call.1} parent=1 // pred_check
      _
    $region39: #{tpu_custom_call.1} parent=1 // pred_check_branch
      %74 = sbr.rel (0) target = $region41
    $region40: #{tpu_custom_call.1} parent=1 // pred_region
      %75 = dma.done [#allocation5], 2048
    $region41: #{tpu_custom_call.1} parent=1 // pred_fallthru
      _
    // Predicated region
    $region42: #{tpu_custom_call.1} parent=1 // pred_check
      _
    $region43: #{tpu_custom_call.1} parent=1 // pred_check_branch
      %77 = sbr.rel (0) target = $region45
    $region44: #{tpu_custom_call.1} parent=1 // pred_region
      %78 = dma.done [#allocation8], 2048
    $region45: #{tpu_custom_call.1} parent=1 // pred_fallthru
      _
    %v79 = vld [vmem:[#allocation2] sm:$0xff]
    %v80 = vld [vmem:[#allocation4] sm:$0xff]
    %v81 = vld [vmem:[#allocation4 + $0x8] sm:$0xff]
    %v82 = vld [vmem:[#allocation4 + $0x10] sm:$0xff]
    %v83 = vld [vmem:[#allocation4 + $0x18] sm:$0xff]
    %v84 = vld [vmem:[%s2] sm:$0x1]
    %v86 = vlaneseq
    %v87 = vshrl.u32 %v86, 7
    %v88 = vsub.s32 0, %v87
    %v89 = vrot.slane %v84, %v88
    %vm91 = vcmask 261120
    %v93 = vsel %vm91, %v79, 0
    %95 = vmatprep.subr.mxu0 0.0
    %96 = vmatpush1.msra.mxu0 0.0
    %97 = vmatprep.subr.mxu0 0.0
    %98 = vmatpush1.msra.mxu0 0.0
    %99 = vmatprep.subr.mxu0 0.0
    %100 = vmatpush1.msra.mxu0 0.0
    %101 = vmatprep.subr.mxu0 0.0
    %102 = vmatpush1.msra.mxu0 0.0
    %103 = vmatprep.subr.mxu0 0.0
    %104 = vmatpush1.msra.mxu0 0.0
    %105 = vmatprep.subr.mxu0 0.0
    %106 = vmatpush1.msra.mxu0 0.0
    %107 = vmatprep.subr.mxu0 0.0
    %108 = vmatpush1.msra.mxu0 0.0
    %109 = vmatprep.subr.mxu0 0.0
    %110 = vmatpush1.msra.mxu0 0.0
    %111 = vmatprep.subr.mxu0 0.0
    %112 = vmatpush1.msra.mxu0 0.0
    %113 = vmatprep.subr.mxu0 0.0
    %114 = vmatpush1.msra.mxu0 0.0
    %115 = vmatprep.subr.mxu0 0.0
    %116 = vmatpush1.msra.mxu0 0.0
    %117 = vmatprep.subr.mxu0 0.0
    %118 = vmatpush1.msra.mxu0 0.0
    %119 = vmatprep.subr.mxu0 0.0
    %120 = vmatpush1.msra.mxu0 %v83
    %121 = vmatprep.subr.mxu0 0.0
    %122 = vmatpush1.msra.mxu0 %v82
    %123 = vmatprep.subr.mxu0 0.0
    %124 = vmatpush1.msra.mxu0 %v81
    %125 = vmatprep.subr.mxu0 0.0
    %126 = vmatpush1.msra.mxu0 %v80
    %127 = vmatprep.subr.mxu0 0.0
    %128 = vmatpush2.msra.mxu0 0.0
    %129 = vmatprep.subr.mxu0 0.0
    %130 = vmatpush2.msra.mxu0 0.0
    %131 = vmatprep.subr.mxu0 0.0
    %132 = vmatpush2.msra.mxu0 0.0
    %133 = vmatprep.subr.mxu0 0.0
    %134 = vmatpush2.msra.mxu0 0.0
    %135 = vmatprep.subr.mxu0 0.0
    %136 = vmatpush2.msra.mxu0 0.0
    %137 = vmatprep.subr.mxu0 0.0
    %138 = vmatpush2.msra.mxu0 0.0
    %139 = vmatprep.subr.mxu0 0.0
    %140 = vmatpush2.msra.mxu0 0.0
    %141 = vmatprep.subr.mxu0 0.0
    %142 = vmatpush2.msra.mxu0 0.0
    %143 = vmatprep.subr.mxu0 0.0
    %144 = vmatpush2.msra.mxu0 0.0
    %145 = vmatprep.subr.mxu0 0.0
    %146 = vmatpush2.msra.mxu0 0.0
    %147 = vmatprep.subr.mxu0 0.0
    %148 = vmatpush2.msra.mxu0 0.0
    %149 = vmatprep.subr.mxu0 0.0
    %150 = vmatpush2.msra.mxu0 0.0
    %151 = vmatprep.subr.mxu0 0.0
    %152 = vmatpush2.msra.mxu0 0.0
    %153 = vmatprep.subr.mxu0 0.0
    %154 = vmatpush2.msra.mxu0 0.0
    %155 = vmatprep.subr.mxu0 0.0
    %156 = vmatpush2.msra.mxu0 0.0
    %157 = vmatprep.subr.mxu0 0.0
    %158 = vmatpush2.msra.mxu0 0.0
    %159 = vmatprep.mubr.f32.mxu0 0.0
    %160 = vmatmul.mubr.f32.gmra.mxu0 %v93
    %v161 = vpop.f32.mrf.mxu0
    %v162 = vadd.f32 %v89, %v161
    %v163 = vpop.f32.mrf.mxu0
    %164 = vdwg.mxu0
    %v165 = vmax.f32 %v162, 0.0
    %v166 = vld [vmem:[#allocation6] sm:$0xff]
    %v167 = vld [vmem:[#allocation6 + $0x8] sm:$0xff]
    %v168 = vld [vmem:[#allocation6 + $0x10] sm:$0xff]
    %v169 = vld [vmem:[#allocation6 + $0x18] sm:$0xff]
    %v170 = vld [vmem:[#allocation6 + $0x20] sm:$0xff]
    %v171 = vld [vmem:[#allocation6 + $0x28] sm:$0xff]
    %v172 = vld [vmem:[#allocation6 + $0x30] sm:$0xff]
    %v173 = vld [vmem:[#allocation6 + $0x38] sm:$0xff]
    %v174 = vld [vmem:[#allocation6 + $0x40] sm:$0xff]
    %v175 = vld [vmem:[#allocation6 + $0x48] sm:$0xff]
    %v176 = vld [vmem:[#allocation6 + $0x50] sm:$0xff]
    %v177 = vld [vmem:[#allocation6 + $0x58] sm:$0xff]
    %v178 = vld [vmem:[#allocation6 + $0x60] sm:$0xff]
    %v179 = vld [vmem:[#allocation6 + $0x68] sm:$0xff]
    %v180 = vld [vmem:[#allocation6 + $0x70] sm:$0xff]
    %v181 = vld [vmem:[#allocation6 + $0x78] sm:$0xff]
    %v182 = vld [vmem:[%s4] sm:$0x1]
    %v184 = vlaneseq
    %v185 = vshrl.u32 %v184, 7
    %v186 = vsub.s32 0, %v185
    %v187 = vrot.slane %v182, %v186
    %189 = vmatprep.subr.mxu0 0.0
    %190 = vmatpush1.msra.mxu0 %v181
    %191 = vmatprep.subr.mxu0 0.0
    %192 = vmatpush1.msra.mxu0 %v180
    %193 = vmatprep.subr.mxu0 0.0
    %194 = vmatpush1.msra.mxu0 %v179
    %195 = vmatprep.subr.mxu0 0.0
    %196 = vmatpush1.msra.mxu0 %v178
    %197 = vmatprep.subr.mxu0 0.0
    %198 = vmatpush1.msra.mxu0 %v177
    %199 = vmatprep.subr.mxu0 0.0
    %200 = vmatpush1.msra.mxu0 %v176
    %201 = vmatprep.subr.mxu0 0.0
    %202 = vmatpush1.msra.mxu0 %v175
    %203 = vmatprep.subr.mxu0 0.0
    %204 = vmatpush1.msra.mxu0 %v174
    %205 = vmatprep.subr.mxu0 0.0
    %206 = vmatpush1.msra.mxu0 %v173
    %207 = vmatprep.subr.mxu0 0.0
    %208 = vmatpush1.msra.mxu0 %v172
    %209 = vmatprep.subr.mxu0 0.0
    %210 = vmatpush1.msra.mxu0 %v171
    %211 = vmatprep.subr.mxu0 0.0
    %212 = vmatpush1.msra.mxu0 %v170
    %213 = vmatprep.subr.mxu0 0.0
    %214 = vmatpush1.msra.mxu0 %v169
    %215 = vmatprep.subr.mxu0 0.0
    %216 = vmatpush1.msra.mxu0 %v168
    %217 = vmatprep.subr.mxu0 0.0
    %218 = vmatpush1.msra.mxu0 %v167
    %219 = vmatprep.subr.mxu0 0.0
    %220 = vmatpush1.msra.mxu0 %v166
    %221 = vmatprep.subr.mxu0 0.0
    %222 = vmatpush2.msra.mxu0 0.0
    %223 = vmatprep.subr.mxu0 0.0
    %224 = vmatpush2.msra.mxu0 0.0
    %225 = vmatprep.subr.mxu0 0.0
    %226 = vmatpush2.msra.mxu0 0.0
    %227 = vmatprep.subr.mxu0 0.0
    %228 = vmatpush2.msra.mxu0 0.0
    %229 = vmatprep.subr.mxu0 0.0
    %230 = vmatpush2.msra.mxu0 0.0
    %231 = vmatprep.subr.mxu0 0.0
    %232 = vmatpush2.msra.mxu0 0.0
    %233 = vmatprep.subr.mxu0 0.0
    %234 = vmatpush2.msra.mxu0 0.0
    %235 = vmatprep.subr.mxu0 0.0
    %236 = vmatpush2.msra.mxu0 0.0
    %237 = vmatprep.subr.mxu0 0.0
    %238 = vmatpush2.msra.mxu0 0.0
    %239 = vmatprep.subr.mxu0 0.0
    %240 = vmatpush2.msra.mxu0 0.0
    %241 = vmatprep.subr.mxu0 0.0
    %242 = vmatpush2.msra.mxu0 0.0
    %243 = vmatprep.subr.mxu0 0.0
    %244 = vmatpush2.msra.mxu0 0.0
    %245 = vmatprep.subr.mxu0 0.0
    %246 = vmatpush2.msra.mxu0 0.0
    %247 = vmatprep.subr.mxu0 0.0
    %248 = vmatpush2.msra.mxu0 0.0
    %249 = vmatprep.subr.mxu0 0.0
    %250 = vmatpush2.msra.mxu0 0.0
    %251 = vmatprep.subr.mxu0 0.0
    %252 = vmatpush2.msra.mxu0 0.0
    %253 = vmatprep.mubr.f32.mxu0 0.0
    %254 = vmatmul.mubr.f32.gmra.mxu0 %v165
    %v255 = vpop.f32.mrf.mxu0
    %v256 = vadd.f32 %v187, %v255
    %v257 = vpop.f32.mrf.mxu0
    %258 = vdwg.mxu0
    %v259 = vmax.f32 %v256, 0.0
    %v260 = vld [vmem:[#allocation7] sm:$0xff]
    %v261 = vld [vmem:[#allocation7 + $0x8] sm:$0xff]
    %v262 = vld [vmem:[#allocation7 + $0x10] sm:$0xff]
    %v263 = vld [vmem:[#allocation7 + $0x18] sm:$0xff]
    %v264 = vld [vmem:[#allocation7 + $0x20] sm:$0xff]
    %v265 = vld [vmem:[#allocation7 + $0x28] sm:$0xff]
    %v266 = vld [vmem:[#allocation7 + $0x30] sm:$0xff]
    %v267 = vld [vmem:[#allocation7 + $0x38] sm:$0xff]
    %v268 = vld [vmem:[#allocation7 + $0x40] sm:$0xff]
    %v269 = vld [vmem:[#allocation7 + $0x48] sm:$0xff]
    %v270 = vld [vmem:[#allocation7 + $0x50] sm:$0xff]
    %v271 = vld [vmem:[#allocation7 + $0x58] sm:$0xff]
    %v272 = vld [vmem:[#allocation7 + $0x60] sm:$0xff]
    %v273 = vld [vmem:[#allocation7 + $0x68] sm:$0xff]
    %v274 = vld [vmem:[#allocation7 + $0x70] sm:$0xff]
    %v275 = vld [vmem:[#allocation7 + $0x78] sm:$0xff]
    %v276 = vld [vmem:[%s6] sm:$0x1]
    %v278 = vlaneseq
    %v279 = vshrl.u32 %v278, 7
    %v280 = vsub.s32 0, %v279
    %v281 = vrot.slane %v276, %v280
    %283 = vmatprep.subr.mxu0 0.0
    %284 = vmatpush1.msra.mxu0 %v275
    %285 = vmatprep.subr.mxu0 0.0
    %286 = vmatpush1.msra.mxu0 %v274
    %287 = vmatprep.subr.mxu0 0.0
    %288 = vmatpush1.msra.mxu0 %v273
    %289 = vmatprep.subr.mxu0 0.0
    %290 = vmatpush1.msra.mxu0 %v272
    %291 = vmatprep.subr.mxu0 0.0
    %292 = vmatpush1.msra.mxu0 %v271
    %293 = vmatprep.subr.mxu0 0.0
    %294 = vmatpush1.msra.mxu0 %v270
    %295 = vmatprep.subr.mxu0 0.0
    %296 = vmatpush1.msra.mxu0 %v269
    %297 = vmatprep.subr.mxu0 0.0
    %298 = vmatpush1.msra.mxu0 %v268
    %299 = vmatprep.subr.mxu0 0.0
    %300 = vmatpush1.msra.mxu0 %v267
    %301 = vmatprep.subr.mxu0 0.0
    %302 = vmatpush1.msra.mxu0 %v266
    %303 = vmatprep.subr.mxu0 0.0
    %304 = vmatpush1.msra.mxu0 %v265
    %305 = vmatprep.subr.mxu0 0.0
    %306 = vmatpush1.msra.mxu0 %v264
    %307 = vmatprep.subr.mxu0 0.0
    %308 = vmatpush1.msra.mxu0 %v263
    %309 = vmatprep.subr.mxu0 0.0
    %310 = vmatpush1.msra.mxu0 %v262
    %311 = vmatprep.subr.mxu0 0.0
    %312 = vmatpush1.msra.mxu0 %v261
    %313 = vmatprep.subr.mxu0 0.0
    %314 = vmatpush1.msra.mxu0 %v260
    %315 = vmatprep.subr.mxu0 0.0
    %316 = vmatpush2.msra.mxu0 0.0
    %317 = vmatprep.subr.mxu0 0.0
    %318 = vmatpush2.msra.mxu0 0.0
    %319 = vmatprep.subr.mxu0 0.0
    %320 = vmatpush2.msra.mxu0 0.0
    %321 = vmatprep.subr.mxu0 0.0
    %322 = vmatpush2.msra.mxu0 0.0
    %323 = vmatprep.subr.mxu0 0.0
    %324 = vmatpush2.msra.mxu0 0.0
    %325 = vmatprep.subr.mxu0 0.0
    %326 = vmatpush2.msra.mxu0 0.0
    %327 = vmatprep.subr.mxu0 0.0
    %328 = vmatpush2.msra.mxu0 0.0
    %329 = vmatprep.subr.mxu0 0.0
    %330 = vmatpush2.msra.mxu0 0.0
    %331 = vmatprep.subr.mxu0 0.0
    %332 = vmatpush2.msra.mxu0 0.0
    %333 = vmatprep.subr.mxu0 0.0
    %334 = vmatpush2.msra.mxu0 0.0
    %335 = vmatprep.subr.mxu0 0.0
    %336 = vmatpush2.msra.mxu0 0.0
    %337 = vmatprep.subr.mxu0 0.0
    %338 = vmatpush2.msra.mxu0 0.0
    %339 = vmatprep.subr.mxu0 0.0
    %340 = vmatpush2.msra.mxu0 0.0
    %341 = vmatprep.subr.mxu0 0.0
    %342 = vmatpush2.msra.mxu0 0.0
    %343 = vmatprep.subr.mxu0 0.0
    %344 = vmatpush2.msra.mxu0 0.0
    %345 = vmatprep.subr.mxu0 0.0
    %346 = vmatpush2.msra.mxu0 0.0
    %347 = vmatprep.mubr.f32.mxu0 0.0
    %348 = vmatmul.mubr.f32.gmra.mxu0 %v259
    %v349 = vpop.f32.mrf.mxu0
    %v350 = vadd.f32 %v281, %v349
    %v351 = vpop.f32.mrf.mxu0
    %352 = vdwg.mxu0
    %v353 = vtanh.pop %v350
    %vm354 = vcmask 31744
    %355 = vst.msk [vmem:[%s7] sm:$0xff] %vm354, %v353
    // Predicated region
    $region46: #{tpu_custom_call.1} parent=1 // pred_check
      _
    $region47: #{tpu_custom_call.1} parent=1 // pred_check_branch
      %357 = sbr.rel (0) target = $region49
    $region48: #{tpu_custom_call.1} parent=1 // pred_region
      _
    $region49: #{tpu_custom_call.1} parent=1 // pred_fallthru
      _
    // Predicated region
    $region50: #{tpu_custom_call.1} parent=1 // pred_check
      _
    $region51: #{tpu_custom_call.1} parent=1 // pred_check_branch
      %359 = sbr.rel (0) target = $region53
    $region52: #{tpu_custom_call.1} parent=1 // pred_region
      _
    $region53: #{tpu_custom_call.1} parent=1 // pred_fallthru
      _
    %360 = vsyncpa [#allocation3], 1
    %361 = vsyncpa [#allocation5], 1
    %362 = vsyncpa [#allocation8], 1

</llo_original>
